<compile_context>
chip_gen: v6e
topology: v6e:2x2x1
jax: 0.10.0
libtpu: 0.0.40
codegen_flags: <defaults>
</compile_context>

<pallas_src>
import math
import functools

import jax
import jax.numpy as jnp
from jax.experimental import pallas as pl
from jax.experimental.pallas import tpu as pltpu


_VMEM_BUDGET_BYTES = 24 * 1024 * 1024   # target for the double-buffered working set
_VMEM_LIMIT_BYTES = 32 * 1024 * 1024    # explicit scoped-VMEM request


def make_pe_table(d_model: int, max_len: int = 500) -> jnp.ndarray:
    """Sinusoidal table, identical to the PyTorch __init__ (always float32)."""
    position = jnp.arange(0, max_len, dtype=jnp.float32)[:, None]              # (L, 1)
    div_term = jnp.exp(
        jnp.arange(0, d_model, 2, dtype=jnp.float32) * (-math.log(10000.0) / d_model))
    pe = jnp.zeros((max_len, d_model), dtype=jnp.float32)
    pe = pe.at[:, 0::2].set(jnp.sin(position * div_term))
    pe = pe.at[:, 1::2].set(jnp.cos(position * div_term))
    return pe                                                                   # (L, D)


def _cdiv(a: int, b: int) -> int:
    return -(-a // b)


def _sublanes(dtype) -> int:
    """Rows per physical sublane tile: 8 for 4-byte, 16 for 2-byte, 32 for 1-byte."""
    return max(8, 32 // jnp.dtype(dtype).itemsize)


# --------------------------------------------------------------------------- kernels
def _pe_add_kernel(x_ref, pe_ref, o_ref):
    o_ref[...] = (x_ref[...] + pe_ref[...]).astype(o_ref.dtype)


def _pe_add_dropout_kernel(x_ref, pe_ref, u_ref, o_ref, *, p: float, keep_scale: float):
    # Inverted dropout: drop iff u < p, kept values scaled by 1/(1-p).
    y = x_ref[...] + pe_ref[...]
    keep = u_ref[...] >= p
    o_ref[...] = jnp.where(keep, y * keep_scale, 0.0).astype(o_ref.dtype)


# ---------------------------------------------------------------------- tile sizing
def _row_tile(S: int, sub: int, bytes_per_row: int, total_rows: int) -> int:
    """Largest multiple-of-`sub` divisor of S whose double-buffered block fits the
    VMEM budget; shrunk further (if possible) so the grid has >= 2 steps (megacore)."""
    cap = max((_VMEM_BUDGET_BYTES // max(bytes_per_row, 1)) // sub * sub, sub)
    cap = min(cap, S)
    tile = sub
    for t in range(cap, sub - 1, -sub):
        if S % t == 0:
            tile = t
            break
    while total_rows // tile < 2 and tile > sub:
        smaller = sub
        for t in range(tile - sub, sub - 1, -sub):
            if S % t == 0:
                smaller = t
                break
        tile = smaller
    return tile


def _flat_tiles(B: int, N: int, sub: int, x_size: int, o_size: int, with_mask: bool):
    """(row_block, col_tile) for the flattened (B, S*D) layout.  Block bytes are
    computed with the batch dim padded up to the sublane tile (the previous
    version under-counted this by up to 4x for small B)."""
    m_size = 4 if with_mask else 0

    def col_bytes(rows_padded):
        # Double-buffered: x + out (+ mask) blocks have `rows_padded` sublanes;
        # the broadcast pe block is 1 row padded to 8 sublanes of f32.
        return 2 * (rows_padded * (x_size + o_size + m_size) + 8 * 4)

    b_pad = _cdiv(B, sub) * sub
    if col_bytes(b_pad) * 128 <= _VMEM_BUDGET_BYTES:
        rb = B                                   # whole batch fits in one row block
    else:
        rb = max((_VMEM_BUDGET_BYTES // (col_bytes(1) * 128)) // sub * sub, sub)
        rb = min(rb, B)                          # batch-chunk axis for very large B
    rb_pad = _cdiv(rb, sub) * sub

    t = max((_VMEM_BUDGET_BYTES // max(col_bytes(rb_pad), 1)) // 128 * 128, 128)
    if t >= N:
        t = N
    # Guarantee >= 2 grid steps for v7x megacore when the array is big enough.
    if _cdiv(B, rb) * _cdiv(N, t) < 2 and N >= 256:
        t = max((N // 2) // 128 * 128, 128)
    return rb, t


# -------------------------------------------------------------------------- wrapper
def position_embedding(x, pe_full, *, p: float = 0.1, training: bool = False,
                       rng_key=None):
    """Forward of PositionEmbedding: dropout(x + pe[:S]).  x: (B, S, D)."""
    B, S, D = x.shape
    if pe_full.shape[0] < S:
        raise ValueError("sequence length exceeds the positional-encoding table")

    # Match torch promotion: fp32 pe buffer added to x, result in the promoted dtype.
    out_dtype = jnp.result_type(x.dtype, pe_full.dtype)
    use_dropout = bool(training) and p > 0.0
    if use_dropout and p >= 1.0:                       # guard: p==1 drops everything
        return jnp.zeros((B, S, D), out_dtype)

    x_size = jnp.dtype(x.dtype).itemsize
    o_size = jnp.dtype(out_dtype).itemsize
    sub = _sublanes(x.dtype)

    uniforms = None
    keep_scale = 1.0
    if use_dropout:
        if rng_key is None:
            rng_key = jax.random.PRNGKey(0)
        keep_scale = 1.0 / (1.0 - p)
        # Mask generated outside the kernel -> independent of tiling heuristics and
        # works in interpret mode (pltpu.prng_* has no CPU lowering).
        uniforms = jax.random.uniform(rng_key, (B, S, D), dtype=jnp.float32)

    if D % 128 == 0 and S % sub == 0:
        # ---- row layout: (B*S, D), sublane- and lane-dense regardless of B ----
        rows = B * S
        bytes_per_row = 2 * D * (x_size + o_size + 4 + (4 if use_dropout else 0))
        tile_rows = _row_tile(S, sub, bytes_per_row, rows)
        blocks_per_seq = S // tile_rows
        grid = (rows // tile_rows,)
        row_spec = pl.BlockSpec((tile_rows, D), lambda i: (i, 0))
        pe_spec = pl.BlockSpec((tile_rows, D), lambda i: (i % blocks_per_seq, 0))
        semantics = ("parallel",)
        operands = [x.reshape(rows, D), pe_full]       # pe table used as-is (no slice)
        in_specs = [row_spec, pe_spec]
        if use_dropout:
            operands.append(uniforms.reshape(rows, D))
            in_specs.append(row_spec)
        out_spec = row_spec
        out_shape = jax.ShapeDtypeStruct((rows, D), out_dtype)
    else:
        # ---- flat layout: (B, S*D), lane-dense fallback ----
        N = S * D
        rb, t = _flat_tiles(B, N, sub, x_size, o_size, use_dropout)
        grid = (_cdiv(B, rb), _cdiv(N, t))
        blk_spec = pl.BlockSpec((rb, t), lambda r, c: (r, c))
        pe_spec = pl.BlockSpec((1, t), lambda r, c: (0, c))   # one pe DMA per col tile
        semantics = ("parallel", "parallel")
        operands = [x.reshape(B, N), pe_full[:S, :].reshape(1, N)]
        in_specs = [blk_spec, pe_spec]
        if use_dropout:
            operands.append(uniforms.reshape(B, N))
            in_specs.append(blk_spec)
        out_spec = blk_spec
        out_shape = jax.ShapeDtypeStruct((B, N), out_dtype)

    if use_dropout:
        kernel = functools.partial(_pe_add_dropout_kernel,
                                   p=float(p), keep_scale=float(keep_scale))
    else:
        kernel = _pe_add_kernel

    out = pl.pallas_call(
        kernel,
        out_shape=out_shape,
        grid=grid,
        in_specs=in_specs,
        out_specs=out_spec,
        compiler_params=pltpu.CompilerParams(
            dimension_semantics=semantics,
            vmem_limit_bytes=_VMEM_LIMIT_BYTES,
        ),
    )(*operands)

    return out.reshape(B, S, D)


# ----------------------------------------------------------------------------- test
if __name__ == "__main__":
    key = jax.random.PRNGKey(0)
    k1, k2, k3 = jax.random.split(key, 3)

    # Flat-layout path: the module's small shape (batch=2, seq=8, d_model=32).
    B, S, D = 2, 8, 32
    x = jax.random.normal(k1, (B, S, D), dtype=jnp.float32)
    pe_full = make_pe_table(D, max_len=500)
    ref = x + pe_full[:S, :][None, :, :]

    out = jax.block_until_ready(position_embedding(x, pe_full, p=0.1, training=False))
    assert out.shape == (B, S, D)
    assert jnp.allclose(out, ref, atol=1e-6), "eval-mode mismatch (flat layout)"

    # Row-layout path: D % 128 == 0 and S % 8 == 0.
    B2, S2, D2 = 2, 16, 128
    x2 = jax.random.normal(k2, (B2, S2, D2), dtype=jnp.float32)
    pe_full2 = make_pe_table(D2, max_len=500)
    ref2 = x2 + pe_full2[:S2, :][None, :, :]
    out2 = jax.block_until_ready(position_embedding(x2, pe_full2, p=0.1, training=False))
    assert out2.shape == (B2, S2, D2)
    assert jnp.allclose(out2, ref2, atol=1e-6), "eval-mode mismatch (row layout)"

    # Training mode: every element must be 0 (dropped) or ref/(1-p) (kept).
    p = 0.1
    out_tr = jax.block_until_ready(
        position_embedding(x, pe_full, p=p, training=True, rng_key=k3))
    scaled = ref / (1.0 - p)
    ok = jnp.isclose(out_tr, 0.0, atol=1e-6) | jnp.isclose(out_tr, scaled,
                                                           rtol=1e-5, atol=1e-5)
    assert out_tr.shape == (B, S, D)
    assert bool(jnp.all(ok)), "training-mode dropout invariant violated"

    print("KERNEL_OK")
</pallas_src>

<mosaic_0001>
module attributes {stable_mosaic.version = 11 : i64} {
  func.func @_pe_add_kernel(%arg0: i32, %arg1: i32, %arg2: memref<2x128xf32, #tpu.memory_space<vmem>>, %arg3: memref<1x128xf32, #tpu.memory_space<vmem>>, %arg4: memref<2x128xf32, #tpu.memory_space<vmem>>) attributes {dimension_semantics = [#tpu.dimension_semantics<parallel>, #tpu.dimension_semantics<parallel>], iteration_bounds = array<i64: 1, 2>, scalar_prefetch = 0 : i64, scratch_operands = 0 : i64, tpu.core_type = #tpu.core_type<tc>, window_params = [{transform_indices = @transform_0, window_bounds = array<i64: 2, 128>}, {transform_indices = @transform_1, window_bounds = array<i64: 1, 128>}, {transform_indices = @transform_2, window_bounds = array<i64: 2, 128>}]} {
    %c0 = arith.constant 0 : index
    %c0_0 = arith.constant 0 : index
    %0 = vector.load %arg2[%c0, %c0_0] : memref<2x128xf32, #tpu.memory_space<vmem>>, vector<2x128xf32>
    %c0_1 = arith.constant 0 : index
    %c0_2 = arith.constant 0 : index
    %1 = vector.load %arg3[%c0_1, %c0_2] : memref<1x128xf32, #tpu.memory_space<vmem>>, vector<1x128xf32>
    %2 = vector.broadcast %1 : vector<1x128xf32> to vector<2x128xf32>
    %3 = arith.addf %0, %2 : vector<2x128xf32>
    %c0_3 = arith.constant 0 : index
    %c0_4 = arith.constant 0 : index
    %4 = vector.load %arg4[%c0_3, %c0_4] : memref<2x128xf32, #tpu.memory_space<vmem>>, vector<2x128xf32>
    tpu.vector_store %arg4[%c0_3, %c0_4], %3 {strides = array<i32>} : memref<2x128xf32, #tpu.memory_space<vmem>>, vector<2x128xf32>,
    return
  }
  func.func @transform_0(%arg0: i32, %arg1: i32) -> (i32, i32) {
    %c0_i32 = arith.constant 0 : i32
    return %arg0, %arg1 : i32, i32
  }
  func.func @transform_1(%arg0: i32, %arg1: i32) -> (i32, i32) {
    %c0_i32 = arith.constant 0 : i32
    %c0_i32_0 = arith.constant 0 : i32
    return %c0_i32, %arg1 : i32, i32
  }
  func.func @transform_2(%arg0: i32, %arg1: i32) -> (i32, i32) {
    %c0_i32 = arith.constant 0 : i32
    return %arg0, %arg1 : i32, i32
  }
}

</mosaic_0001>

<llo_original>
// kernel: tpu_custom_call.1
$region0: #{tpu_custom_call.1}
  #allocation0 [shape = 'u32[]', space=smem, size = 0x4, offset = 0x4, fixed_abs, tag = 'smem constant byte address 0x4 - core index']
  #allocation1 [shape = 'u32[144,128]{1,0:T(1,128)}', space=vmem, size = 0x12000, scoped, tag = 'internal scratch']
  %s0 = inlined_call_operand.hbm [shape: f32[2,256], index: 0, kind: input, shape index: {}]
  %s1 = inlined_call_operand.hbm [shape: f32[1,256], index: 1, kind: input, shape index: {}]
  %s2 = inlined_call_operand.hbm [shape: f32[2,256], index: 2, kind: output, shape index: {}]
  %s3 = sld [smem:[#allocation0]]
  $region49: #{tpu_custom_call.1} parent=0
    _
  %s5 = ssub.s32 1, %s3
  %s6 = scalar_select 0, %s5, %s3
  $region1: #{tpu_custom_call.1} parent=0
    #allocation2 [shape = 'u8[2048]{0}', space=vmem, size = 0x800, scoped, tag = 'input window, operand 0']
    #allocation3 [shape = 's32[2]{0}', space=sflag, size = 0x8, scoped, tag = 'scoped memory for tpu_custom_call.1']
    #allocation4 [shape = 's32[2]{0}', space=sflag, size = 0x8, scoped, tag = 'scoped memory for tpu_custom_call.1']
    #allocation5 [shape = 'u8[1024]{0}', space=vmem, size = 0x400, scoped, tag = 'input window, operand 1']
    #allocation6 [shape = 's32[2]{0}', space=sflag, size = 0x8, scoped, tag = 'scoped memory for tpu_custom_call.1']
    #allocation7 [shape = 'u8[2048]{0}', space=vmem, size = 0x800, scoped, tag = 'output window, operand 0']
    %7 = vsyncpa [#allocation3], 0
    %s8 = scalar_lea.sflag [#allocation3], 1
    %9 = vsyncpa %s8, 0
    %10 = vsyncpa [#allocation6], 0
    %s11 = scalar_lea.sflag [#allocation6], 1
    %12 = vsyncpa %s11, 0
    %13 = vsyncpa [#allocation4], 0
    %s14 = scalar_lea.sflag [#allocation4], 1
    %15 = vsyncpa %s14, 0
    loop: start=0, step=1, limit=4
    $region2: #{tpu_custom_call.1} parent=1 // loop_pre_header
      _
    $region3: #{tpu_custom_call.1} parent=1 // loop_header
      %s17 = sphi 0, %s21
      %p18 = scmp.ge.s32.totalorder %s17, 4
      %s24 = sphi 0, %s36
      %s25 = sphi 0, %s32
      %s26 = sphi 0, %s24
      %s27 = sphi 0, %s25
      %s28 = sphi 0, %s26
      %s29 = sphi 0, %s27
      %s41 = sphi 0, %s43
      %s44 = sphi 0, %s41
      %s45 = sphi 0, %s44
      %s61 = sphi 0, %s45
      %s67 = sphi 0, %s69
      %s70 = sphi 0, %s67
      %s71 = sphi 0, %s70
      %s87 = sphi 0, %s71
      %s95 = sphi 0, %s97
      %s98 = sphi 0, %s95
      %s99 = sphi 0, %s98
      %s115 = sphi 0, %s99
    $region4: #{tpu_custom_call.1} parent=1 // loop_header_branch
      %20 = sbr.rel (%p18) target = $region8
    $region5: #{tpu_custom_call.1} parent=1 // loop_body
      %s22 = ssub.s32 %s17, 1
      %s23 = ssub.s32 %s17, 2
      %s30 = sadd.s32 1, %s25
      %p31 = scmp.ge.s32.totalorder %s30, 2
      %s32 = scalar_select %p31, 0, %s30
      %s33 = sadd.s32 1, %s24
      %s34 = scalar_select %p31, %s33, %s24
      %p35 = scmp.ge.s32.totalorder %s34, 1
      %s36 = scalar_select %p35, 0, %s34
      %s37 = ssub.s32 %s24, %s36
      %s38 = ssub.s32 %s25, %s32
      %s39 = sor.u32 %s37, %s38
      %p40 = scmp.eq.s32.totalorder %s39, 0
      %s42 = sadd.s32 %s41, 1
      %s43 = scalar_select %p40, %s41, %s42
      %p46 = pneg %p40
      %p47 = scmp.eq.s32.totalorder %s17, 1
      %p48 = por %p46, %p47
      %p49 = scmp.ne.s32.totalorder %s41, %s44
      %p50 = scmp.eq.s32.totalorder %s17, 0
      %p51 = por %p49, %p50
      %p52 = scmp.ne.s32.totalorder %s41, %s44
      %p53 = scmp.eq.s32.totalorder %s22, 1
      %p54 = por %p52, %p53
      %p55 = scmp.ne.s32.totalorder %s44, %s45
      %p56 = scmp.eq.s32.totalorder %s22, 0
      %p57 = por %p55, %p56
      %p58 = scmp.ne.s32.totalorder %s44, %s45
      %p59 = scmp.eq.s32.totalorder %s23, 1
      %p60 = por %p58, %p59
      %p62 = scmp.ne.s32.totalorder %s45, %s61
      %p63 = scmp.eq.s32.totalorder %s23, 0
      %p64 = por %p62, %p63
      %s65 = ssub.s32 %s25, %s32
      %p66 = scmp.eq.s32.totalorder %s65, 0
      %s68 = sadd.s32 %s67, 1
      %s69 = scalar_select %p66, %s67, %s68
      %p72 = pneg %p66
      %p73 = scmp.eq.s32.totalorder %s17, 1
      %p74 = por %p72, %p73
      %p75 = scmp.ne.s32.totalorder %s67, %s70
      %p76 = scmp.eq.s32.totalorder %s17, 0
      %p77 = por %p75, %p76
      %p78 = scmp.ne.s32.totalorder %s67, %s70
      %p79 = scmp.eq.s32.totalorder %s22, 1
      %p80 = por %p78, %p79
      %p81 = scmp.ne.s32.totalorder %s70, %s71
      %p82 = scmp.eq.s32.totalorder %s22, 0
      %p83 = por %p81, %p82
      %p84 = scmp.ne.s32.totalorder %s70, %s71
      %p85 = scmp.eq.s32.totalorder %s23, 1
      %p86 = por %p84, %p85
      %p88 = scmp.ne.s32.totalorder %s71, %s87
      %p89 = scmp.eq.s32.totalorder %s23, 0
      %p90 = por %p88, %p89
      %s91 = ssub.s32 %s24, %s36
      %s92 = ssub.s32 %s25, %s32
      %s93 = sor.u32 %s91, %s92
      %p94 = scmp.eq.s32.totalorder %s93, 0
      %s96 = sadd.s32 %s95, 1
      %s97 = scalar_select %p94, %s95, %s96
      %p100 = pneg %p94
      %p101 = scmp.eq.s32.totalorder %s17, 1
      %p102 = por %p100, %p101
      %p103 = scmp.ne.s32.totalorder %s95, %s98
      %p104 = scmp.eq.s32.totalorder %s17, 0
      %p105 = por %p103, %p104
      %p106 = scmp.ne.s32.totalorder %s95, %s98
      %p107 = scmp.eq.s32.totalorder %s22, 1
      %p108 = por %p106, %p107
      %p109 = scmp.ne.s32.totalorder %s98, %s99
      %p110 = scmp.eq.s32.totalorder %s22, 0
      %p111 = por %p109, %p110
      %p112 = scmp.ne.s32.totalorder %s98, %s99
      %p113 = scmp.eq.s32.totalorder %s23, 1
      %p114 = por %p112, %p113
      %p116 = scmp.ne.s32.totalorder %s99, %s115
      %p117 = scmp.eq.s32.totalorder %s23, 0
      %p118 = por %p116, %p117
      %p119 = scmp.le.s32.totalorder 1, %s17
      %p120 = scmp.lt.s32.totalorder %s17, 3
      %p121 = pnand %p119, %p120
      %p122 = pneg %p121
      // Predicated region
      $region9: #{tpu_custom_call.1} parent=5 // pred_check
        _
      $region10: #{tpu_custom_call.1} parent=5 // pred_check_branch
        %124 = sbr.rel (%p121) target = $region12
      $region11: #{tpu_custom_call.1} parent=5 // pred_region
        %s125 = ssub.s32 %s17, 1
      $region12: #{tpu_custom_call.1} parent=5 // pred_fallthru
        _
      %p126 = scmp.lt.s32.totalorder %s17, 2
      // Predicated region
      $region13: #{tpu_custom_call.1} parent=5 // pred_check
        %p127 = pneg %p126
      $region14: #{tpu_custom_call.1} parent=5 // pred_check_branch
        %129 = sbr.rel (%p127) target = $region16
      $region15: #{tpu_custom_call.1} parent=5 // pred_region
        // Predicated region
        $region17: #{tpu_custom_call.1} parent=15 // pred_check
          %p130 = pneg %p51
        $region18: #{tpu_custom_call.1} parent=15 // pred_check_branch
          %132 = sbr.rel (%p130) target = $region20
        $region19: #{tpu_custom_call.1} parent=15 // pred_region
          %s133 = sand.u32 %s41, 1
          %s134 = scalar_lea.sflag [#allocation3], %s133
          %s135 = sand.u32 %s41, 1
          %s136 = smul.addr %s135, 2
          %s137 = scalar_lea.vmem [#allocation2], %s136
          %s139 = ssub.s32 32, 32
          %140 = vsyncadd %s134, %s139
          %s141 = smul.addr %s24, 2
          %s142 = sadd.s32 %s25, %s141
          %s143 = smul.addr %s142, 32
          %s144 = scalar_lea.hbm %s0, %s143
          %s146 = sshll.u32 %s137, 4
          %s147 = int_to_ptr.vmem [resolvable:$true] %s146
          %149 = dma.hbm_to_vmem [thread:$0]  %s144, 32, %s147, %s134
        $region20: #{tpu_custom_call.1} parent=15 // pred_fallthru
          _
        // Predicated region
        $region21: #{tpu_custom_call.1} parent=15 // pred_check
          %p150 = pneg %p77
        $region22: #{tpu_custom_call.1} parent=15 // pred_check_branch
          %152 = sbr.rel (%p150) target = $region24
        $region23: #{tpu_custom_call.1} parent=15 // pred_region
          %s153 = sand.u32 %s67, 1
          %s154 = scalar_lea.sflag [#allocation6], %s153
          %s155 = sand.u32 %s67, 1
          %s156 = scalar_lea.vmem [#allocation5], %s155
          %s158 = ssub.s32 16, 16
          %159 = vsyncadd %s154, %s158
          %s160 = smul.addr %s25, 16
          %s161 = scalar_lea.hbm %s1, %s160
          %s163 = sshll.u32 %s156, 4
          %s164 = int_to_ptr.vmem [resolvable:$true] %s163
          %166 = dma.hbm_to_vmem [thread:$0]  %s161, 16, %s164, %s154
        $region24: #{tpu_custom_call.1} parent=15 // pred_fallthru
          _
      $region16: #{tpu_custom_call.1} parent=5 // pred_fallthru
        _
      %p167 = scmp.le.s32.totalorder 1, %s17
      %p168 = scmp.lt.s32.totalorder %s17, 3
      %p169 = pnand %p167, %p168
      %p170 = pneg %p169
      // Predicated region
      $region25: #{tpu_custom_call.1} parent=5 // pred_check
        _
      $region26: #{tpu_custom_call.1} parent=5 // pred_check_branch
        %172 = sbr.rel (%p169) target = $region28
      $region27: #{tpu_custom_call.1} parent=5 // pred_region
        %s173 = ssub.s32 %s17, 1
        %s174 = sand.u32 %s44, 1
        %s175 = scalar_lea.sflag [#allocation3], %s174
        %s176 = sand.u32 %s44, 1
        %s177 = smul.addr %s176, 2
        %s178 = scalar_lea.vmem [#allocation2], %s177
        // Predicated region
        $region29: #{tpu_custom_call.1} parent=27 // pred_check
          %p179 = pneg %p57
        $region30: #{tpu_custom_call.1} parent=27 // pred_check_branch
          %181 = sbr.rel (%p179) target = $region32
        $region31: #{tpu_custom_call.1} parent=27 // pred_region
          %182 = dma.done %s175, 32
        $region32: #{tpu_custom_call.1} parent=27 // pred_fallthru
          _
        %s183 = sand.u32 %s70, 1
        %s184 = scalar_lea.sflag [#allocation6], %s183
        %s185 = sand.u32 %s70, 1
        %s186 = scalar_lea.vmem [#allocation5], %s185
        // Predicated region
        $region33: #{tpu_custom_call.1} parent=27 // pred_check
          %p187 = pneg %p83
        $region34: #{tpu_custom_call.1} parent=27 // pred_check_branch
          %189 = sbr.rel (%p187) target = $region36
        $region35: #{tpu_custom_call.1} parent=27 // pred_region
          %190 = dma.done %s184, 16
        $region36: #{tpu_custom_call.1} parent=27 // pred_fallthru
          _
        %s191 = sand.u32 %s44, 1
        %s192 = scalar_lea.sflag [#allocation3], %s191
        %s193 = sand.u32 %s44, 1
        %s194 = smul.addr %s193, 2
        %s195 = scalar_lea.vmem [#allocation2], %s194
        %p196 = pneg %p57
        %p197 = pneg %p54
        %s198 = sand.u32 %s70, 1
        %s199 = scalar_lea.sflag [#allocation6], %s198
        %s200 = sand.u32 %s70, 1
        %s201 = scalar_lea.vmem [#allocation5], %s200
        %p202 = pneg %p83
        %p203 = pneg %p80
        %p204 = pneg %p111
        %p205 = pneg %p108
        %s206 = sand.u32 %s98, 1
        %s207 = scalar_lea.sflag [#allocation4], %s206
        %s208 = sand.u32 %s98, 1
        %s209 = smul.addr %s208, 2
        %s210 = scalar_lea.vmem [#allocation7], %s209
        %v211 = vld [vmem:[%s178] sm:$0x3]
        %v212 = vld [vmem:[%s186] sm:$0x1]
        %v214 = vlaneseq
        %v215 = vshrl.u32 %v214, 7
        %v216 = vsub.s32 0, %v215
        %v217 = vrot.slane %v212, %v216
        %v219 = vadd.f32 %v211, %v217
        %220 = vst [vmem:[%s210] sm:$0x3] %v219
        %s221 = sand.u32 %s98, 1
        %s222 = scalar_lea.sflag [#allocation4], %s221
        %s223 = sand.u32 %s98, 1
        %s224 = smul.addr %s223, 2
        %s225 = scalar_lea.vmem [#allocation7], %s224
        // Predicated region
        $region37: #{tpu_custom_call.1} parent=27 // pred_check
          %p226 = pneg %p108
        $region38: #{tpu_custom_call.1} parent=27 // pred_check_branch
          %228 = sbr.rel (%p226) target = $region40
        $region39: #{tpu_custom_call.1} parent=27 // pred_region
          %s230 = ssub.s32 32, 32
          %231 = vsyncadd %s222, %s230
          %s232 = smul.addr %s26, 2
          %s233 = sadd.s32 %s27, %s232
          %s234 = smul.addr %s233, 32
          %s235 = scalar_lea.hbm %s2, %s234
          %s237 = sshll.u32 %s225, 4
          %s238 = int_to_ptr.vmem [resolvable:$true] %s237
          %240 = dma.vmem_to_hbm [thread:$0]  %s238, 32, %s235, %s222
        $region40: #{tpu_custom_call.1} parent=27 // pred_fallthru
          _
      $region28: #{tpu_custom_call.1} parent=5 // pred_fallthru
        _
      %p241 = scmp.le.s32.totalorder 2, %s17
      // Predicated region
      $region41: #{tpu_custom_call.1} parent=5 // pred_check
        %p242 = pneg %p241
      $region42: #{tpu_custom_call.1} parent=5 // pred_check_branch
        %244 = sbr.rel (%p242) target = $region44
      $region43: #{tpu_custom_call.1} parent=5 // pred_region
        %s245 = ssub.s32 %s17, 2
        // Predicated region
        $region45: #{tpu_custom_call.1} parent=43 // pred_check
          %p246 = pneg %p114
        $region46: #{tpu_custom_call.1} parent=43 // pred_check_branch
          %248 = sbr.rel (%p246) target = $region48
        $region47: #{tpu_custom_call.1} parent=43 // pred_region
          %s249 = sand.u32 %s99, 1
          %s250 = scalar_lea.sflag [#allocation4], %s249
          %s251 = sand.u32 %s99, 1
          %s252 = smul.addr %s251, 2
          %s253 = scalar_lea.vmem [#allocation7], %s252
          %254 = dma.done %s250, 32
        $region48: #{tpu_custom_call.1} parent=43 // pred_fallthru
          _
      $region44: #{tpu_custom_call.1} parent=5 // pred_fallthru
        _
    $region6: #{tpu_custom_call.1} parent=1 // loop_footer
      %s21 = sadd.s32 1, %s17
    $region7: #{tpu_custom_call.1} parent=1 // loop_footer_branch
      %16 = sbr.rel target = $region3
    $region8: #{tpu_custom_call.1} parent=1 // loop_exit
      _
    %255 = vsyncpa [#allocation3], 1
    %s256 = scalar_lea.sflag [#allocation3], 1
    %257 = vsyncpa %s256, 1
    %258 = vsyncpa [#allocation6], 1
    %s259 = scalar_lea.sflag [#allocation6], 1
    %260 = vsyncpa %s259, 1
    %261 = vsyncpa [#allocation4], 1
    %s262 = scalar_lea.sflag [#allocation4], 1
    %263 = vsyncpa %s262, 1

</llo_original>
